<compile_context>
chip_gen: v6e
topology: v6e:2x2x1
jax: 0.10.0
libtpu: 0.0.40
codegen_flags: <defaults>
</compile_context>

<pallas_src>
import jax
import jax.numpy as jnp
from jax.experimental import pallas as pl
from jax.experimental.pallas import tpu as pltpu

IN_FEATS = 48 * 4 * 4   # 768
HID = 100
OUT = 2
HID_PAD = 128           # hidden padded to lane width
OUT_PAD = 128           # fc2 weight columns padded to lane width (MXU-friendly tile)
TB_MAX = 512            # batch tile: amortizes per-step overhead, ~4.5 MiB working set


def _round_up(n, m):
    return ((n + m - 1) // m) * m


def _domain_regressor_kernel(x_ref, w1_ref, b1_ref, w2_ref, b2_ref, o_ref):
    # fc1 + ReLU. Padded hidden columns stay exactly 0 (zero weights/bias, relu(0)=0).
    h = jnp.dot(x_ref[...], w1_ref[...], preferred_element_type=jnp.float32)
    h = jnp.maximum(h + b1_ref[...], 0.0)

    # fc2 on the padded 128x128 weight tile (zero-padded hidden rows contribute nothing).
    z = jnp.dot(h, w2_ref[...], preferred_element_type=jnp.float32) + b2_ref[...]

    # 2-class log-softmax without masking or cross-lane reductions (single exp):
    #   lse = max(a, b) + log1p(exp(-|a - b|))   on 1-lane column slices.
    a = z[:, 0:1]
    b = z[:, 1:2]
    m = jnp.maximum(a, b)
    lse = m + jnp.log1p(jnp.exp(-jnp.abs(a - b)))
    o_ref[...] = z[:, :OUT] - lse          # narrow (TB, 2) writeback


def prepare_params(w1, b1, w2, b2):
    """Pad the tiny weights/biases to lane width once (zero pads keep the math exact).

    w1: (768, 100), b1: (100,), w2: (100, 2), b2: (2,)   -- (in, out) layout,
    i.e. transposed vs PyTorch's nn.Linear (out, in) weight storage.
    """
    w1_p = jnp.zeros((IN_FEATS, HID_PAD), jnp.float32).at[:, :HID].set(w1.astype(jnp.float32))
    b1_p = jnp.zeros((1, HID_PAD), jnp.float32).at[0, :HID].set(b1.astype(jnp.float32))
    w2_p = jnp.zeros((HID_PAD, OUT_PAD), jnp.float32).at[:HID, :OUT].set(w2.astype(jnp.float32))
    b2_p = jnp.zeros((1, OUT_PAD), jnp.float32).at[0, :OUT].set(b2.astype(jnp.float32))
    return w1_p, b1_p, w2_p, b2_p


@jax.jit
def domain_regressor_apply(x, w1_p, b1_p, w2_p, b2_p):
    """x: (B, 768); padded params from prepare_params. Returns (B, 2) log-probs."""
    B = x.shape[0]
    x = x.astype(jnp.float32)

    # Minimal batch pad to a sublane multiple of 8 (no-op when already aligned).
    Bp = _round_up(B, 8)
    if Bp != B:
        x = jnp.pad(x, ((0, Bp - B), (0, 0)))

    # Batch tile: whole (padded) batch when small, else TB_MAX rows per grid step.
    TB = min(TB_MAX, Bp)
    grid = (pl.cdiv(Bp, TB),)

    out = pl.pallas_call(
        _domain_regressor_kernel,
        out_shape=jax.ShapeDtypeStruct((Bp, OUT), jnp.float32),
        grid=grid,
        in_specs=[
            pl.BlockSpec((TB, IN_FEATS), lambda i: (i, 0)),       # batch-tiled activations
            pl.BlockSpec((IN_FEATS, HID_PAD), lambda i: (0, 0)),  # weights: VMEM-resident
            pl.BlockSpec((1, HID_PAD), lambda i: (0, 0)),
            pl.BlockSpec((HID_PAD, OUT_PAD), lambda i: (0, 0)),
            pl.BlockSpec((1, OUT_PAD), lambda i: (0, 0)),
        ],
        out_specs=pl.BlockSpec((TB, OUT), lambda i: (i, 0)),
        compiler_params=pltpu.CompilerParams(
            dimension_semantics=("parallel",),   # v7x: two TensorCores split the batch grid
        ),
    )(x, w1_p, b1_p, w2_p, b2_p)

    return out[:B]


def domain_regressor(x, w1, b1, w2, b2):
    """Convenience wrapper: pads params then applies the kernel."""
    return domain_regressor_apply(x, *prepare_params(w1, b1, w2, b2))


def _init_params(key):
    """Deterministic init matching nn.Linear shapes (uniform +-1/sqrt(fan_in))."""
    k1, k2, k3, k4 = jax.random.split(key, 4)
    lim1 = 1.0 / jnp.sqrt(IN_FEATS)
    lim2 = 1.0 / jnp.sqrt(HID)
    # Stored as (in, out) — transposed relative to PyTorch's (out, in).
    w1 = jax.random.uniform(k1, (IN_FEATS, HID), jnp.float32, -lim1, lim1)
    b1 = jax.random.uniform(k2, (HID,), jnp.float32, -lim1, lim1)
    w2 = jax.random.uniform(k3, (HID, OUT), jnp.float32, -lim2, lim2)
    b2 = jax.random.uniform(k4, (OUT,), jnp.float32, -lim2, lim2)
    return w1, b1, w2, b2


def _reference(x, w1, b1, w2, b2):
    h = jnp.maximum(x @ w1 + b1, 0.0)
    z = h @ w2 + b2
    return jax.nn.log_softmax(z, axis=1)


if __name__ == "__main__":
    key = jax.random.PRNGKey(0)
    kx, kx2, kp = jax.random.split(key, 3)
    w1, b1, w2, b2 = _init_params(kp)
    padded = prepare_params(w1, b1, w2, b2)   # one-time weight padding (outside jit path)

    # Primary small-shape check (batch=2, features 48*4*4=768).
    x = jax.random.normal(kx, (2, IN_FEATS), jnp.float32)
    out = domain_regressor_apply(x, *padded)
    jax.block_until_ready(out)
    ref = _reference(x, w1, b1, w2, b2)
    assert out.shape == (2, OUT), out.shape
    assert jnp.allclose(out, ref, atol=1e-5, rtol=1e-5), (out, ref)

    # Ragged batch (not a multiple of 8) to exercise the minimal-pad path.
    x2 = jax.random.normal(kx2, (50, IN_FEATS), jnp.float32)
    out2 = domain_regressor_apply(x2, *padded)
    jax.block_until_ready(out2)
    ref2 = _reference(x2, w1, b1, w2, b2)
    assert out2.shape == (50, OUT), out2.shape
    assert jnp.allclose(out2, ref2, atol=1e-5, rtol=1e-5)

    print("KERNEL_OK")
</pallas_src>

<mosaic_0001>
module attributes {stable_mosaic.version = 11 : i64} {
  func.func @_domain_regressor_kernel(%arg0: i32, %arg1: memref<8x768xf32, #tpu.memory_space<vmem>>, %arg2: memref<768x128xf32, #tpu.memory_space<vmem>>, %arg3: memref<1x128xf32, #tpu.memory_space<vmem>>, %arg4: memref<128x128xf32, #tpu.memory_space<vmem>>, %arg5: memref<1x128xf32, #tpu.memory_space<vmem>>, %arg6: memref<8x2xf32, #tpu.memory_space<vmem>>) attributes {dimension_semantics = [#tpu.dimension_semantics<parallel>], iteration_bounds = array<i64: 1>, scalar_prefetch = 0 : i64, scratch_operands = 0 : i64, tpu.core_type = #tpu.core_type<tc>, window_params = [{transform_indices = @transform_0, window_bounds = array<i64: 8, 768>}, {pipeline_mode = #tpu.pipeline_mode<synchronous>, transform_indices = @transform_1, window_bounds = array<i64: 768, 128>}, {pipeline_mode = #tpu.pipeline_mode<synchronous>, transform_indices = @transform_2, window_bounds = array<i64: 1, 128>}, {pipeline_mode = #tpu.pipeline_mode<synchronous>, transform_indices = @transform_3, window_bounds = array<i64: 128, 128>}, {pipeline_mode = #tpu.pipeline_mode<synchronous>, transform_indices = @transform_4, window_bounds = array<i64: 1, 128>}, {transform_indices = @transform_5, window_bounds = array<i64: 8, 2>}]} {
    %c0 = arith.constant 0 : index
    %c0_0 = arith.constant 0 : index
    %0 = vector.load %arg1[%c0, %c0_0] : memref<8x768xf32, #tpu.memory_space<vmem>>, vector<8x768xf32>
    %c0_1 = arith.constant 0 : index
    %c0_2 = arith.constant 0 : index
    %1 = vector.load %arg2[%c0_1, %c0_2] : memref<768x128xf32, #tpu.memory_space<vmem>>, vector<768x128xf32>
    %cst = arith.constant dense<0.000000e+00> : vector<8x128xf32>
    %2 = tpu.matmul %0, %1, %cst {dimension_numbers = #tpu.dot_dimension_numbers<[1], [0], [0], [1], [0, 0, 1, 1], [], []>} : vector<8x768xf32>, vector<768x128xf32>, vector<8x128xf32> -> vector<8x128xf32>
    %c0_3 = arith.constant 0 : index
    %c0_4 = arith.constant 0 : index
    %3 = vector.load %arg3[%c0_3, %c0_4] : memref<1x128xf32, #tpu.memory_space<vmem>>, vector<1x128xf32>
    %4 = vector.broadcast %3 : vector<1x128xf32> to vector<8x128xf32>
    %5 = arith.addf %2, %4 : vector<8x128xf32>
    %cst_5 = arith.constant 0.000000e+00 : f32
    %6 = vector.broadcast %cst_5 : f32 to vector<8x128xf32>
    %7 = arith.maximumf %5, %6 : vector<8x128xf32>
    %c0_6 = arith.constant 0 : index
    %c0_7 = arith.constant 0 : index
    %8 = vector.load %arg4[%c0_6, %c0_7] : memref<128x128xf32, #tpu.memory_space<vmem>>, vector<128x128xf32>
    %cst_8 = arith.constant dense<0.000000e+00> : vector<8x128xf32>
    %9 = tpu.matmul %7, %8, %cst_8 {dimension_numbers = #tpu.dot_dimension_numbers<[1], [0], [0], [1], [0, 0, 1, 1], [], []>} : vector<8x128xf32>, vector<128x128xf32>, vector<8x128xf32> -> vector<8x128xf32>
    %c0_9 = arith.constant 0 : index
    %c0_10 = arith.constant 0 : index
    %10 = vector.load %arg5[%c0_9, %c0_10] : memref<1x128xf32, #tpu.memory_space<vmem>>, vector<1x128xf32>
    %11 = vector.broadcast %10 : vector<1x128xf32> to vector<8x128xf32>
    %12 = arith.addf %9, %11 : vector<8x128xf32>
    %13 = vector.extract_strided_slice %12 {offsets = [0, 0], sizes = [8, 1], strides = [1, 1]} : vector<8x128xf32> to vector<8x1xf32>
    %14 = vector.extract_strided_slice %12 {offsets = [0, 1], sizes = [8, 1], strides = [1, 1]} : vector<8x128xf32> to vector<8x1xf32>
    %15 = arith.maximumf %13, %14 : vector<8x1xf32>
    %16 = arith.subf %13, %14 : vector<8x1xf32>
    %17 = math.absf %16 : vector<8x1xf32>
    %cst_11 = arith.constant 0.000000e+00 : f32
    %18 = vector.broadcast %cst_11 : f32 to vector<8x1xf32>
    %19 = arith.subf %18, %17 : vector<8x1xf32>
    %20 = math.exp %19 : vector<8x1xf32>
    %21 = math.log1p %20 : vector<8x1xf32>
    %22 = arith.addf %15, %21 : vector<8x1xf32>
    %23 = vector.extract_strided_slice %12 {offsets = [0, 0], sizes = [8, 2], strides = [1, 1]} : vector<8x128xf32> to vector<8x2xf32>
    %24 = vector.broadcast %22 : vector<8x1xf32> to vector<8x2xf32>
    %25 = arith.subf %23, %24 : vector<8x2xf32>
    %c0_12 = arith.constant 0 : index
    %c0_13 = arith.constant 0 : index
    %26 = vector.load %arg6[%c0_12, %c0_13] : memref<8x2xf32, #tpu.memory_space<vmem>>, vector<8x2xf32>
    tpu.vector_store %arg6[%c0_12, %c0_13], %25 {strides = array<i32>} : memref<8x2xf32, #tpu.memory_space<vmem>>, vector<8x2xf32>,
    return
  }
  func.func @transform_0(%arg0: i32) -> (i32, i32) {
    %c0_i32 = arith.constant 0 : i32
    %c0_i32_0 = arith.constant 0 : i32
    return %arg0, %c0_i32 : i32, i32
  }
  func.func @transform_1(%arg0: i32) -> (i32, i32) {
    %c0_i32 = arith.constant 0 : i32
    %c0_i32_0 = arith.constant 0 : i32
    %c0_i32_1 = arith.constant 0 : i32
    return %c0_i32, %c0_i32_0 : i32, i32
  }
  func.func @transform_2(%arg0: i32) -> (i32, i32) {
    %c0_i32 = arith.constant 0 : i32
    %c0_i32_0 = arith.constant 0 : i32
    %c0_i32_1 = arith.constant 0 : i32
    return %c0_i32, %c0_i32_0 : i32, i32
  }
  func.func @transform_3(%arg0: i32) -> (i32, i32) {
    %c0_i32 = arith.constant 0 : i32
    %c0_i32_0 = arith.constant 0 : i32
    %c0_i32_1 = arith.constant 0 : i32
    return %c0_i32, %c0_i32_0 : i32, i32
  }
  func.func @transform_4(%arg0: i32) -> (i32, i32) {
    %c0_i32 = arith.constant 0 : i32
    %c0_i32_0 = arith.constant 0 : i32
    %c0_i32_1 = arith.constant 0 : i32
    return %c0_i32, %c0_i32_0 : i32, i32
  }
  func.func @transform_5(%arg0: i32) -> (i32, i32) {
    %c0_i32 = arith.constant 0 : i32
    %c0_i32_0 = arith.constant 0 : i32
    return %arg0, %c0_i32 : i32, i32
  }
}

</mosaic_0001>

<llo_original>
// kernel: domain_regressor_apply.1
$region0: #{domain_regressor_apply.1}
  #allocation0 [shape = 'u32[]', space=smem, size = 0x4, offset = 0x4, fixed_abs, tag = 'smem constant byte address 0x4 - core index']
  #allocation1 [shape = 'u32[144,128]{1,0:T(1,128)}', space=vmem, size = 0x12000, scoped, tag = 'internal scratch']
  %s0 = inlined_call_operand.vmem [shape: f32[8,768], index: 0, kind: input, shape index: {}]
  %s1 = inlined_call_operand.hbm [shape: f32[768,128], index: 1, kind: input, shape index: {}]
  %s2 = inlined_call_operand.vmem [shape: f32[1,128], index: 2, kind: input, shape index: {}]
  %s3 = inlined_call_operand.hbm [shape: f32[128,128], index: 3, kind: input, shape index: {}]
  %s4 = inlined_call_operand.vmem [shape: f32[1,128], index: 4, kind: input, shape index: {}]
  %s5 = inlined_call_operand.vmem [shape: f32[8,2], index: 5, kind: output, shape index: {}]
  %s6 = sld [smem:[#allocation0]]
  $region38: #{domain_regressor_apply.1} parent=0
    _
  %s8 = ssub.s32 1, %s6
  %s9 = scalar_select 0, %s8, %s6
  $region1: #{domain_regressor_apply.1} parent=0
    #allocation2 [shape = 'u8[393216]{0}', space=vmem, size = 0x60000, scoped, tag = 'input window, operand 1, single buffered']
    #allocation3 [shape = 's32[1]{0}', space=sflag, size = 0x4, scoped, tag = 'scoped memory for domain_regressor_apply.1']
    #allocation4 [shape = 'u8[65536]{0}', space=vmem, size = 0x10000, scoped, tag = 'input window, operand 3, single buffered']
    #allocation5 [shape = 's32[1]{0}', space=sflag, size = 0x4, scoped, tag = 'scoped memory for domain_regressor_apply.1']
    %10 = vsyncpa [#allocation3], 0
    %11 = vsyncpa [#allocation5], 0
    // Predicated region
    $region2: #{domain_regressor_apply.1} parent=1 // pred_check
      _
    $region3: #{domain_regressor_apply.1} parent=1 // pred_check_branch
      %13 = sbr.rel (0) target = $region5
    $region4: #{domain_regressor_apply.1} parent=1 // pred_region
      _
    $region5: #{domain_regressor_apply.1} parent=1 // pred_fallthru
      _
    // Predicated region
    $region6: #{domain_regressor_apply.1} parent=1 // pred_check
      _
    $region7: #{domain_regressor_apply.1} parent=1 // pred_check_branch
      %15 = sbr.rel (0) target = $region9
    $region8: #{domain_regressor_apply.1} parent=1 // pred_region
      %s17 = ssub.s32 12288, 12288
      %18 = vsyncadd [#allocation3], %s17
      %s19 = sshll.u32 [#allocation2], 4
      %s20 = int_to_ptr.vmem [resolvable:$true] %s19
      %25 = dma.hbm_to_vmem [thread:$0]  %s1, 12288, %s20, [#allocation3], 128, 128, 8
    $region9: #{domain_regressor_apply.1} parent=1 // pred_fallthru
      _
    // Predicated region
    $region10: #{domain_regressor_apply.1} parent=1 // pred_check
      _
    $region11: #{domain_regressor_apply.1} parent=1 // pred_check_branch
      %27 = sbr.rel (0) target = $region13
    $region12: #{domain_regressor_apply.1} parent=1 // pred_region
      _
    $region13: #{domain_regressor_apply.1} parent=1 // pred_fallthru
      _
    // Predicated region
    $region14: #{domain_regressor_apply.1} parent=1 // pred_check
      _
    $region15: #{domain_regressor_apply.1} parent=1 // pred_check_branch
      %29 = sbr.rel (0) target = $region17
    $region16: #{domain_regressor_apply.1} parent=1 // pred_region
      %s31 = ssub.s32 2048, 2048
      %32 = vsyncadd [#allocation5], %s31
      %s33 = sshll.u32 [#allocation4], 4
      %s34 = int_to_ptr.vmem [resolvable:$true] %s33
      %39 = dma.hbm_to_vmem [thread:$0]  %s3, 2048, %s34, [#allocation5], 128, 128, 8
    $region17: #{domain_regressor_apply.1} parent=1 // pred_fallthru
      _
    // Predicated region
    $region18: #{domain_regressor_apply.1} parent=1 // pred_check
      _
    $region19: #{domain_regressor_apply.1} parent=1 // pred_check_branch
      %41 = sbr.rel (0) target = $region21
    $region20: #{domain_regressor_apply.1} parent=1 // pred_region
      _
    $region21: #{domain_regressor_apply.1} parent=1 // pred_fallthru
      _
    // Predicated region
    $region22: #{domain_regressor_apply.1} parent=1 // pred_check
      _
    $region23: #{domain_regressor_apply.1} parent=1 // pred_check_branch
      %43 = sbr.rel (0) target = $region25
    $region24: #{domain_regressor_apply.1} parent=1 // pred_region
      %44 = dma.done [#allocation3], 12288
    $region25: #{domain_regressor_apply.1} parent=1 // pred_fallthru
      _
    // Predicated region
    $region26: #{domain_regressor_apply.1} parent=1 // pred_check
      _
    $region27: #{domain_regressor_apply.1} parent=1 // pred_check_branch
      %46 = sbr.rel (0) target = $region29
    $region28: #{domain_regressor_apply.1} parent=1 // pred_region
      %47 = dma.done [#allocation5], 2048
    $region29: #{domain_regressor_apply.1} parent=1 // pred_fallthru
      _
    %v48 = vld [vmem:[%s0] sm:$0xff]
    %v49 = vld [vmem:[%s0 + $0x8] sm:$0xff]
    %v50 = vld [vmem:[%s0 + $0x10] sm:$0xff]
    %v51 = vld [vmem:[%s0 + $0x18] sm:$0xff]
    %v52 = vld [vmem:[%s0 + $0x20] sm:$0xff]
    %v53 = vld [vmem:[%s0 + $0x28] sm:$0xff]
    %v54 = vld [vmem:[#allocation2] sm:$0xff]
    %v55 = vld [vmem:[#allocation2 + $0x8] sm:$0xff]
    %v56 = vld [vmem:[#allocation2 + $0x10] sm:$0xff]
    %v57 = vld [vmem:[#allocation2 + $0x18] sm:$0xff]
    %v58 = vld [vmem:[#allocation2 + $0x20] sm:$0xff]
    %v59 = vld [vmem:[#allocation2 + $0x28] sm:$0xff]
    %v60 = vld [vmem:[#allocation2 + $0x30] sm:$0xff]
    %v61 = vld [vmem:[#allocation2 + $0x38] sm:$0xff]
    %v62 = vld [vmem:[#allocation2 + $0x40] sm:$0xff]
    %v63 = vld [vmem:[#allocation2 + $0x48] sm:$0xff]
    %v64 = vld [vmem:[#allocation2 + $0x50] sm:$0xff]
    %v65 = vld [vmem:[#allocation2 + $0x58] sm:$0xff]
    %v66 = vld [vmem:[#allocation2 + $0x60] sm:$0xff]
    %v67 = vld [vmem:[#allocation2 + $0x68] sm:$0xff]
    %v68 = vld [vmem:[#allocation2 + $0x70] sm:$0xff]
    %v69 = vld [vmem:[#allocation2 + $0x78] sm:$0xff]
    %v70 = vld [vmem:[#allocation2 + $0x80] sm:$0xff]
    %v71 = vld [vmem:[#allocation2 + $0x88] sm:$0xff]
    %v72 = vld [vmem:[#allocation2 + $0x90] sm:$0xff]
    %v73 = vld [vmem:[#allocation2 + $0x98] sm:$0xff]
    %v74 = vld [vmem:[#allocation2 + $0xa0] sm:$0xff]
    %v75 = vld [vmem:[#allocation2 + $0xa8] sm:$0xff]
    %v76 = vld [vmem:[#allocation2 + $0xb0] sm:$0xff]
    %v77 = vld [vmem:[#allocation2 + $0xb8] sm:$0xff]
    %v78 = vld [vmem:[#allocation2 + $0xc0] sm:$0xff]
    %v79 = vld [vmem:[#allocation2 + $0xc8] sm:$0xff]
    %v80 = vld [vmem:[#allocation2 + $0xd0] sm:$0xff]
    %v81 = vld [vmem:[#allocation2 + $0xd8] sm:$0xff]
    %v82 = vld [vmem:[#allocation2 + $0xe0] sm:$0xff]
    %v83 = vld [vmem:[#allocation2 + $0xe8] sm:$0xff]
    %v84 = vld [vmem:[#allocation2 + $0xf0] sm:$0xff]
    %v85 = vld [vmem:[#allocation2 + $0xf8] sm:$0xff]
    %v86 = vld [vmem:[#allocation2 + $0x100] sm:$0xff]
    %v87 = vld [vmem:[#allocation2 + $0x108] sm:$0xff]
    %v88 = vld [vmem:[#allocation2 + $0x110] sm:$0xff]
    %v89 = vld [vmem:[#allocation2 + $0x118] sm:$0xff]
    %v90 = vld [vmem:[#allocation2 + $0x120] sm:$0xff]
    %v91 = vld [vmem:[#allocation2 + $0x128] sm:$0xff]
    %v92 = vld [vmem:[#allocation2 + $0x130] sm:$0xff]
    %v93 = vld [vmem:[#allocation2 + $0x138] sm:$0xff]
    %v94 = vld [vmem:[#allocation2 + $0x140] sm:$0xff]
    %v95 = vld [vmem:[#allocation2 + $0x148] sm:$0xff]
    %v96 = vld [vmem:[#allocation2 + $0x150] sm:$0xff]
    %v97 = vld [vmem:[#allocation2 + $0x158] sm:$0xff]
    %v98 = vld [vmem:[#allocation2 + $0x160] sm:$0xff]
    %v99 = vld [vmem:[#allocation2 + $0x168] sm:$0xff]
    %v100 = vld [vmem:[#allocation2 + $0x170] sm:$0xff]
    %v101 = vld [vmem:[#allocation2 + $0x178] sm:$0xff]
    %v102 = vld [vmem:[#allocation2 + $0x180] sm:$0xff]
    %v103 = vld [vmem:[#allocation2 + $0x188] sm:$0xff]
    %v104 = vld [vmem:[#allocation2 + $0x190] sm:$0xff]
    %v105 = vld [vmem:[#allocation2 + $0x198] sm:$0xff]
    %v106 = vld [vmem:[#allocation2 + $0x1a0] sm:$0xff]
    %v107 = vld [vmem:[#allocation2 + $0x1a8] sm:$0xff]
    %v108 = vld [vmem:[#allocation2 + $0x1b0] sm:$0xff]
    %v109 = vld [vmem:[#allocation2 + $0x1b8] sm:$0xff]
    %v110 = vld [vmem:[#allocation2 + $0x1c0] sm:$0xff]
    %v111 = vld [vmem:[#allocation2 + $0x1c8] sm:$0xff]
    %v112 = vld [vmem:[#allocation2 + $0x1d0] sm:$0xff]
    %v113 = vld [vmem:[#allocation2 + $0x1d8] sm:$0xff]
    %v114 = vld [vmem:[#allocation2 + $0x1e0] sm:$0xff]
    %v115 = vld [vmem:[#allocation2 + $0x1e8] sm:$0xff]
    %v116 = vld [vmem:[#allocation2 + $0x1f0] sm:$0xff]
    %v117 = vld [vmem:[#allocation2 + $0x1f8] sm:$0xff]
    %v118 = vld [vmem:[#allocation2 + $0x200] sm:$0xff]
    %v119 = vld [vmem:[#allocation2 + $0x208] sm:$0xff]
    %v120 = vld [vmem:[#allocation2 + $0x210] sm:$0xff]
    %v121 = vld [vmem:[#allocation2 + $0x218] sm:$0xff]
    %v122 = vld [vmem:[#allocation2 + $0x220] sm:$0xff]
    %v123 = vld [vmem:[#allocation2 + $0x228] sm:$0xff]
    %v124 = vld [vmem:[#allocation2 + $0x230] sm:$0xff]
    %v125 = vld [vmem:[#allocation2 + $0x238] sm:$0xff]
    %v126 = vld [vmem:[#allocation2 + $0x240] sm:$0xff]
    %v127 = vld [vmem:[#allocation2 + $0x248] sm:$0xff]
    %v128 = vld [vmem:[#allocation2 + $0x250] sm:$0xff]
    %v129 = vld [vmem:[#allocation2 + $0x258] sm:$0xff]
    %v130 = vld [vmem:[#allocation2 + $0x260] sm:$0xff]
    %v131 = vld [vmem:[#allocation2 + $0x268] sm:$0xff]
    %v132 = vld [vmem:[#allocation2 + $0x270] sm:$0xff]
    %v133 = vld [vmem:[#allocation2 + $0x278] sm:$0xff]
    %v134 = vld [vmem:[#allocation2 + $0x280] sm:$0xff]
    %v135 = vld [vmem:[#allocation2 + $0x288] sm:$0xff]
    %v136 = vld [vmem:[#allocation2 + $0x290] sm:$0xff]
    %v137 = vld [vmem:[#allocation2 + $0x298] sm:$0xff]
    %v138 = vld [vmem:[#allocation2 + $0x2a0] sm:$0xff]
    %v139 = vld [vmem:[#allocation2 + $0x2a8] sm:$0xff]
    %v140 = vld [vmem:[#allocation2 + $0x2b0] sm:$0xff]
    %v141 = vld [vmem:[#allocation2 + $0x2b8] sm:$0xff]
    %v142 = vld [vmem:[#allocation2 + $0x2c0] sm:$0xff]
    %v143 = vld [vmem:[#allocation2 + $0x2c8] sm:$0xff]
    %v144 = vld [vmem:[#allocation2 + $0x2d0] sm:$0xff]
    %v145 = vld [vmem:[#allocation2 + $0x2d8] sm:$0xff]
    %v146 = vld [vmem:[#allocation2 + $0x2e0] sm:$0xff]
    %v147 = vld [vmem:[#allocation2 + $0x2e8] sm:$0xff]
    %v148 = vld [vmem:[#allocation2 + $0x2f0] sm:$0xff]
    %v149 = vld [vmem:[#allocation2 + $0x2f8] sm:$0xff]
    %v150 = vld [vmem:[%s2] sm:$0x1]
    %v152 = vlaneseq
    %v153 = vshrl.u32 %v152, 7
    %v154 = vsub.s32 0, %v153
    %v155 = vrot.slane %v150, %v154
    %157 = vmatprep.subr.mxu0 0.0
    %158 = vmatpush1.msra.mxu0 %v69
    %159 = vmatprep.subr.mxu0 0.0
    %160 = vmatpush1.msra.mxu0 %v68
    %161 = vmatprep.subr.mxu0 0.0
    %162 = vmatpush1.msra.mxu0 %v67
    %163 = vmatprep.subr.mxu0 0.0
    %164 = vmatpush1.msra.mxu0 %v66
    %165 = vmatprep.subr.mxu0 0.0
    %166 = vmatpush1.msra.mxu0 %v65
    %167 = vmatprep.subr.mxu0 0.0
    %168 = vmatpush1.msra.mxu0 %v64
    %169 = vmatprep.subr.mxu0 0.0
    %170 = vmatpush1.msra.mxu0 %v63
    %171 = vmatprep.subr.mxu0 0.0
    %172 = vmatpush1.msra.mxu0 %v62
    %173 = vmatprep.subr.mxu0 0.0
    %174 = vmatpush1.msra.mxu0 %v61
    %175 = vmatprep.subr.mxu0 0.0
    %176 = vmatpush1.msra.mxu0 %v60
    %177 = vmatprep.subr.mxu0 0.0
    %178 = vmatpush1.msra.mxu0 %v59
    %179 = vmatprep.subr.mxu0 0.0
    %180 = vmatpush1.msra.mxu0 %v58
    %181 = vmatprep.subr.mxu0 0.0
    %182 = vmatpush1.msra.mxu0 %v57
    %183 = vmatprep.subr.mxu0 0.0
    %184 = vmatpush1.msra.mxu0 %v56
    %185 = vmatprep.subr.mxu0 0.0
    %186 = vmatpush1.msra.mxu0 %v55
    %187 = vmatprep.subr.mxu0 0.0
    %188 = vmatpush1.msra.mxu0 %v54
    %189 = vmatprep.subr.mxu0 0.0
    %190 = vmatpush2.msra.mxu0 %v85
    %191 = vmatprep.subr.mxu0 0.0
    %192 = vmatpush2.msra.mxu0 %v84
    %193 = vmatprep.subr.mxu0 0.0
    %194 = vmatpush2.msra.mxu0 %v83
    %195 = vmatprep.subr.mxu0 0.0
    %196 = vmatpush2.msra.mxu0 %v82
    %197 = vmatprep.subr.mxu0 0.0
    %198 = vmatpush2.msra.mxu0 %v81
    %199 = vmatprep.subr.mxu0 0.0
    %200 = vmatpush2.msra.mxu0 %v80
    %201 = vmatprep.subr.mxu0 0.0
    %202 = vmatpush2.msra.mxu0 %v79
    %203 = vmatprep.subr.mxu0 0.0
    %204 = vmatpush2.msra.mxu0 %v78
    %205 = vmatprep.subr.mxu0 0.0
    %206 = vmatpush2.msra.mxu0 %v77
    %207 = vmatprep.subr.mxu0 0.0
    %208 = vmatpush2.msra.mxu0 %v76
    %209 = vmatprep.subr.mxu0 0.0
    %210 = vmatpush2.msra.mxu0 %v75
    %211 = vmatprep.subr.mxu0 0.0
    %212 = vmatpush2.msra.mxu0 %v74
    %213 = vmatprep.subr.mxu0 0.0
    %214 = vmatpush2.msra.mxu0 %v73
    %215 = vmatprep.subr.mxu0 0.0
    %216 = vmatpush2.msra.mxu0 %v72
    %217 = vmatprep.subr.mxu0 0.0
    %218 = vmatpush2.msra.mxu0 %v71
    %219 = vmatprep.subr.mxu0 0.0
    %220 = vmatpush2.msra.mxu0 %v70
    %221 = vmatprep.mubr.f32.mxu0 %v49
    %222 = vmatmul.mubr.f32.gmra.mxu0 %v48
    %v223 = vpop.f32.mrf.mxu0
    %v224 = vadd.f32 %v155, %v223
    %v225 = vpop.f32.mrf.mxu0
    %226 = vdwg.mxu0
    %227 = vmatprep.subr.mxu0 0.0
    %228 = vmatpush1.msra.mxu0 %v101
    %229 = vmatprep.subr.mxu0 0.0
    %230 = vmatpush1.msra.mxu0 %v100
    %231 = vmatprep.subr.mxu0 0.0
    %232 = vmatpush1.msra.mxu0 %v99
    %233 = vmatprep.subr.mxu0 0.0
    %234 = vmatpush1.msra.mxu0 %v98
    %235 = vmatprep.subr.mxu0 0.0
    %236 = vmatpush1.msra.mxu0 %v97
    %237 = vmatprep.subr.mxu0 0.0
    %238 = vmatpush1.msra.mxu0 %v96
    %239 = vmatprep.subr.mxu0 0.0
    %240 = vmatpush1.msra.mxu0 %v95
    %241 = vmatprep.subr.mxu0 0.0
    %242 = vmatpush1.msra.mxu0 %v94
    %243 = vmatprep.subr.mxu0 0.0
    %244 = vmatpush1.msra.mxu0 %v93
    %245 = vmatprep.subr.mxu0 0.0
    %246 = vmatpush1.msra.mxu0 %v92
    %247 = vmatprep.subr.mxu0 0.0
    %248 = vmatpush1.msra.mxu0 %v91
    %249 = vmatprep.subr.mxu0 0.0
    %250 = vmatpush1.msra.mxu0 %v90
    %251 = vmatprep.subr.mxu0 0.0
    %252 = vmatpush1.msra.mxu0 %v89
    %253 = vmatprep.subr.mxu0 0.0
    %254 = vmatpush1.msra.mxu0 %v88
    %255 = vmatprep.subr.mxu0 0.0
    %256 = vmatpush1.msra.mxu0 %v87
    %257 = vmatprep.subr.mxu0 0.0
    %258 = vmatpush1.msra.mxu0 %v86
    %259 = vmatprep.subr.mxu0 0.0
    %260 = vmatpush2.msra.mxu0 %v117
    %261 = vmatprep.subr.mxu0 0.0
    %262 = vmatpush2.msra.mxu0 %v116
    %263 = vmatprep.subr.mxu0 0.0
    %264 = vmatpush2.msra.mxu0 %v115
    %265 = vmatprep.subr.mxu0 0.0
    %266 = vmatpush2.msra.mxu0 %v114
    %267 = vmatprep.subr.mxu0 0.0
    %268 = vmatpush2.msra.mxu0 %v113
    %269 = vmatprep.subr.mxu0 0.0
    %270 = vmatpush2.msra.mxu0 %v112
    %271 = vmatprep.subr.mxu0 0.0
    %272 = vmatpush2.msra.mxu0 %v111
    %273 = vmatprep.subr.mxu0 0.0
    %274 = vmatpush2.msra.mxu0 %v110
    %275 = vmatprep.subr.mxu0 0.0
    %276 = vmatpush2.msra.mxu0 %v109
    %277 = vmatprep.subr.mxu0 0.0
    %278 = vmatpush2.msra.mxu0 %v108
    %279 = vmatprep.subr.mxu0 0.0
    %280 = vmatpush2.msra.mxu0 %v107
    %281 = vmatprep.subr.mxu0 0.0
    %282 = vmatpush2.msra.mxu0 %v106
    %283 = vmatprep.subr.mxu0 0.0
    %284 = vmatpush2.msra.mxu0 %v105
    %285 = vmatprep.subr.mxu0 0.0
    %286 = vmatpush2.msra.mxu0 %v104
    %287 = vmatprep.subr.mxu0 0.0
    %288 = vmatpush2.msra.mxu0 %v103
    %289 = vmatprep.subr.mxu0 0.0
    %290 = vmatpush2.msra.mxu0 %v102
    %291 = vmatprep.mubr.f32.mxu0 %v51
    %292 = vmatmul.mubr.f32.gmra.mxu0 %v50
    %v293 = vpop.f32.mrf.mxu0
    %v294 = vadd.f32 %v224, %v293
    %v295 = vpop.f32.mrf.mxu0
    %296 = vdwg.mxu0
    %297 = vmatprep.subr.mxu0 0.0
    %298 = vmatpush1.msra.mxu0 %v133
    %299 = vmatprep.subr.mxu0 0.0
    %300 = vmatpush1.msra.mxu0 %v132
    %301 = vmatprep.subr.mxu0 0.0
    %302 = vmatpush1.msra.mxu0 %v131
    %303 = vmatprep.subr.mxu0 0.0
    %304 = vmatpush1.msra.mxu0 %v130
    %305 = vmatprep.subr.mxu0 0.0
    %306 = vmatpush1.msra.mxu0 %v129
    %307 = vmatprep.subr.mxu0 0.0
    %308 = vmatpush1.msra.mxu0 %v128
    %309 = vmatprep.subr.mxu0 0.0
    %310 = vmatpush1.msra.mxu0 %v127
    %311 = vmatprep.subr.mxu0 0.0
    %312 = vmatpush1.msra.mxu0 %v126
    %313 = vmatprep.subr.mxu0 0.0
    %314 = vmatpush1.msra.mxu0 %v125
    %315 = vmatprep.subr.mxu0 0.0
    %316 = vmatpush1.msra.mxu0 %v124
    %317 = vmatprep.subr.mxu0 0.0
    %318 = vmatpush1.msra.mxu0 %v123
    %319 = vmatprep.subr.mxu0 0.0
    %320 = vmatpush1.msra.mxu0 %v122
    %321 = vmatprep.subr.mxu0 0.0
    %322 = vmatpush1.msra.mxu0 %v121
    %323 = vmatprep.subr.mxu0 0.0
    %324 = vmatpush1.msra.mxu0 %v120
    %325 = vmatprep.subr.mxu0 0.0
    %326 = vmatpush1.msra.mxu0 %v119
    %327 = vmatprep.subr.mxu0 0.0
    %328 = vmatpush1.msra.mxu0 %v118
    %329 = vmatprep.subr.mxu0 0.0
    %330 = vmatpush2.msra.mxu0 %v149
    %331 = vmatprep.subr.mxu0 0.0
    %332 = vmatpush2.msra.mxu0 %v148
    %333 = vmatprep.subr.mxu0 0.0
    %334 = vmatpush2.msra.mxu0 %v147
    %335 = vmatprep.subr.mxu0 0.0
    %336 = vmatpush2.msra.mxu0 %v146
    %337 = vmatprep.subr.mxu0 0.0
    %338 = vmatpush2.msra.mxu0 %v145
    %339 = vmatprep.subr.mxu0 0.0
    %340 = vmatpush2.msra.mxu0 %v144
    %341 = vmatprep.subr.mxu0 0.0
    %342 = vmatpush2.msra.mxu0 %v143
    %343 = vmatprep.subr.mxu0 0.0
    %344 = vmatpush2.msra.mxu0 %v142
    %345 = vmatprep.subr.mxu0 0.0
    %346 = vmatpush2.msra.mxu0 %v141
    %347 = vmatprep.subr.mxu0 0.0
    %348 = vmatpush2.msra.mxu0 %v140
    %349 = vmatprep.subr.mxu0 0.0
    %350 = vmatpush2.msra.mxu0 %v139
    %351 = vmatprep.subr.mxu0 0.0
    %352 = vmatpush2.msra.mxu0 %v138
    %353 = vmatprep.subr.mxu0 0.0
    %354 = vmatpush2.msra.mxu0 %v137
    %355 = vmatprep.subr.mxu0 0.0
    %356 = vmatpush2.msra.mxu0 %v136
    %357 = vmatprep.subr.mxu0 0.0
    %358 = vmatpush2.msra.mxu0 %v135
    %359 = vmatprep.subr.mxu0 0.0
    %360 = vmatpush2.msra.mxu0 %v134
    %361 = vmatprep.mubr.f32.mxu0 %v53
    %362 = vmatmul.mubr.f32.gmra.mxu0 %v52
    %v363 = vpop.f32.mrf.mxu0
    %v364 = vadd.f32 %v294, %v363
    %v365 = vpop.f32.mrf.mxu0
    %366 = vdwg.mxu0
    %v367 = vmax.f32 %v364, 0.0
    %v368 = vld [vmem:[#allocation4] sm:$0xff]
    %v369 = vld [vmem:[#allocation4 + $0x8] sm:$0xff]
    %v370 = vld [vmem:[#allocation4 + $0x10] sm:$0xff]
    %v371 = vld [vmem:[#allocation4 + $0x18] sm:$0xff]
    %v372 = vld [vmem:[#allocation4 + $0x20] sm:$0xff]
    %v373 = vld [vmem:[#allocation4 + $0x28] sm:$0xff]
    %v374 = vld [vmem:[#allocation4 + $0x30] sm:$0xff]
    %v375 = vld [vmem:[#allocation4 + $0x38] sm:$0xff]
    %v376 = vld [vmem:[#allocation4 + $0x40] sm:$0xff]
    %v377 = vld [vmem:[#allocation4 + $0x48] sm:$0xff]
    %v378 = vld [vmem:[#allocation4 + $0x50] sm:$0xff]
    %v379 = vld [vmem:[#allocation4 + $0x58] sm:$0xff]
    %v380 = vld [vmem:[#allocation4 + $0x60] sm:$0xff]
    %v381 = vld [vmem:[#allocation4 + $0x68] sm:$0xff]
    %v382 = vld [vmem:[#allocation4 + $0x70] sm:$0xff]
    %v383 = vld [vmem:[#allocation4 + $0x78] sm:$0xff]
    %v384 = vld [vmem:[%s4] sm:$0x1]
    %v386 = vlaneseq
    %v387 = vshrl.u32 %v386, 7
    %v388 = vsub.s32 0, %v387
    %v389 = vrot.slane %v384, %v388
    %391 = vmatprep.subr.mxu0 0.0
    %392 = vmatpush1.msra.mxu0 %v383
    %393 = vmatprep.subr.mxu0 0.0
    %394 = vmatpush1.msra.mxu0 %v382
    %395 = vmatprep.subr.mxu0 0.0
    %396 = vmatpush1.msra.mxu0 %v381
    %397 = vmatprep.subr.mxu0 0.0
    %398 = vmatpush1.msra.mxu0 %v380
    %399 = vmatprep.subr.mxu0 0.0
    %400 = vmatpush1.msra.mxu0 %v379
    %401 = vmatprep.subr.mxu0 0.0
    %402 = vmatpush1.msra.mxu0 %v378
    %403 = vmatprep.subr.mxu0 0.0
    %404 = vmatpush1.msra.mxu0 %v377
    %405 = vmatprep.subr.mxu0 0.0
    %406 = vmatpush1.msra.mxu0 %v376
    %407 = vmatprep.subr.mxu0 0.0
    %408 = vmatpush1.msra.mxu0 %v375
    %409 = vmatprep.subr.mxu0 0.0
    %410 = vmatpush1.msra.mxu0 %v374
    %411 = vmatprep.subr.mxu0 0.0
    %412 = vmatpush1.msra.mxu0 %v373
    %413 = vmatprep.subr.mxu0 0.0
    %414 = vmatpush1.msra.mxu0 %v372
    %415 = vmatprep.subr.mxu0 0.0
    %416 = vmatpush1.msra.mxu0 %v371
    %417 = vmatprep.subr.mxu0 0.0
    %418 = vmatpush1.msra.mxu0 %v370
    %419 = vmatprep.subr.mxu0 0.0
    %420 = vmatpush1.msra.mxu0 %v369
    %421 = vmatprep.subr.mxu0 0.0
    %422 = vmatpush1.msra.mxu0 %v368
    %423 = vmatprep.subr.mxu0 0.0
    %424 = vmatpush2.msra.mxu0 0.0
    %425 = vmatprep.subr.mxu0 0.0
    %426 = vmatpush2.msra.mxu0 0.0
    %427 = vmatprep.subr.mxu0 0.0
    %428 = vmatpush2.msra.mxu0 0.0
    %429 = vmatprep.subr.mxu0 0.0
    %430 = vmatpush2.msra.mxu0 0.0
    %431 = vmatprep.subr.mxu0 0.0
    %432 = vmatpush2.msra.mxu0 0.0
    %433 = vmatprep.subr.mxu0 0.0
    %434 = vmatpush2.msra.mxu0 0.0
    %435 = vmatprep.subr.mxu0 0.0
    %436 = vmatpush2.msra.mxu0 0.0
    %437 = vmatprep.subr.mxu0 0.0
    %438 = vmatpush2.msra.mxu0 0.0
    %439 = vmatprep.subr.mxu0 0.0
    %440 = vmatpush2.msra.mxu0 0.0
    %441 = vmatprep.subr.mxu0 0.0
    %442 = vmatpush2.msra.mxu0 0.0
    %443 = vmatprep.subr.mxu0 0.0
    %444 = vmatpush2.msra.mxu0 0.0
    %445 = vmatprep.subr.mxu0 0.0
    %446 = vmatpush2.msra.mxu0 0.0
    %447 = vmatprep.subr.mxu0 0.0
    %448 = vmatpush2.msra.mxu0 0.0
    %449 = vmatprep.subr.mxu0 0.0
    %450 = vmatpush2.msra.mxu0 0.0
    %451 = vmatprep.subr.mxu0 0.0
    %452 = vmatpush2.msra.mxu0 0.0
    %453 = vmatprep.subr.mxu0 0.0
    %454 = vmatpush2.msra.mxu0 0.0
    %455 = vmatprep.mubr.f32.mxu0 0.0
    %456 = vmatmul.mubr.f32.gmra.mxu0 %v367
    %v457 = vpop.f32.mrf.mxu0
    %v458 = vadd.f32 %v389, %v457
    %v459 = vpop.f32.mrf.mxu0
    %460 = vdwg.mxu0
    %462 = vrot.lane.b32.xlu0 %v458, 127
    %v463 = vpop.permute.xlu0 %462
    %v465 = vmax.f32 %v458, %v463
    %v466 = vsub.f32 %v458, %v463
    %v467 = vand.u32 2147483647, %v466
    %v468 = vsub.f32 0.0, %v467
    %v469 = vmul.f32 %v468, 1.442695
    %v470 = vpow.pop %v469
    %v471 = vadd.f32 %v470, 1.0
    %v472 = vlog2.pop %v471
    %v473 = vmul.f32 %v472, 0.6931472
    %v474 = vmul.f32 -0.5, %v470
    %v475 = vadd.f32 %v474, 1.0
    %v476 = vmul.f32 %v475, %v470
    %v477 = vand.u32 2147483647, %v470
    %vm478 = vcmp.lt.f32.partialorder %v477, 0.0004427343
    %v479 = vsel %vm478, %v476, %v473
    %v480 = vadd.f32 %v465, %v479
    %482 = vset.pattern.permute.xlu0 0
    %483 = vperm.xlu0 %482, %v480
    %v484 = vpop.permute.xlu0 %483
    %v486 = vsub.f32 %v458, %v484
    %vm487 = vcmask 15360
    %488 = vst.msk [vmem:[%s5] sm:$0xff] %vm487, %v486
    // Predicated region
    $region30: #{domain_regressor_apply.1} parent=1 // pred_check
      _
    $region31: #{domain_regressor_apply.1} parent=1 // pred_check_branch
      %490 = sbr.rel (0) target = $region33
    $region32: #{domain_regressor_apply.1} parent=1 // pred_region
      _
    $region33: #{domain_regressor_apply.1} parent=1 // pred_fallthru
      _
    // Predicated region
    $region34: #{domain_regressor_apply.1} parent=1 // pred_check
      _
    $region35: #{domain_regressor_apply.1} parent=1 // pred_check_branch
      %492 = sbr.rel (0) target = $region37
    $region36: #{domain_regressor_apply.1} parent=1 // pred_region
      _
    $region37: #{domain_regressor_apply.1} parent=1 // pred_fallthru
      _
    %493 = vsyncpa [#allocation3], 1
    %494 = vsyncpa [#allocation5], 1

</llo_original>
